<compile_context>
chip_gen: v6e
topology: v6e:2x2x1
jax: 0.10.0
libtpu: 0.0.40
codegen_flags: <defaults>
</compile_context>

<pallas_src>
import jax
import jax.numpy as jnp
from jax.experimental import pallas as pl
from jax.experimental.pallas import tpu as pltpu


def mlp_kernel(x_ref,
               w1_ref, b1_ref,
               w2_ref, b2_ref,
               w3_ref, b3_ref,
               w4_ref, b4_ref,
               w5_ref, b5_ref,
               o_ref):
    # One (TB, input_size) f32 batch tile per grid step; weights/biases are
    # VMEM-resident (constant index_maps).  All math in f32, f32 accumulation.
    h = x_ref[...]

    h = jnp.dot(h, w1_ref[...], preferred_element_type=jnp.float32) + b1_ref[...]
    h = jnp.maximum(h, 0.0)

    h = jnp.dot(h, w2_ref[...], preferred_element_type=jnp.float32) + b2_ref[...]
    h = jnp.maximum(h, 0.0)

    h = jnp.dot(h, w3_ref[...], preferred_element_type=jnp.float32) + b3_ref[...]
    h = jnp.maximum(h, 0.0)

    h = jnp.dot(h, w4_ref[...], preferred_element_type=jnp.float32) + b4_ref[...]
    h = jnp.maximum(h, 0.0)

    out = jnp.dot(h, w5_ref[...], preferred_element_type=jnp.float32) + b5_ref[...]
    o_ref[...] = out.astype(o_ref.dtype)                       # (TB, 2) f32


def _pick_batch_tile(batch):
    # Overhead-bound kernel: one big tile up to ~4096 rows; a single tile when
    # the whole batch fits (block == full array dim is always legal).
    default_tb = 4096
    if batch <= default_tb:
        return batch
    return default_tb


def _dimension_semantics(n_tiles):
    # Only core_parallel actually shards a grid axis across v7x's 2 TensorCores;
    # on single-TC chips (v5e/v6e) plain "arbitrary" is equivalent.
    try:
        kind = jax.devices()[0].device_kind.lower()
    except Exception:
        kind = ""
    if n_tiles >= 2 and ("v7" in kind or "7x" in kind):
        return (pltpu.CORE_PARALLEL,)
    return ("arbitrary",)


def temp_humid_forward(x, params, batch_tile=None):
    """x: (B, input_size) f32. params: list of (W (in,out) f32, b (1,out) f32)."""
    B, in_dim = x.shape
    out_dim = params[-1][0].shape[1]

    tb = batch_tile if batch_tile is not None else _pick_batch_tile(B)
    n_tiles = pl.cdiv(B, tb)
    b_pad = n_tiles * tb
    if b_pad != B:
        # Pad only the ragged remainder; padded rows are sliced off below.
        x = jnp.pad(x, ((0, b_pad - B), (0, 0)))

    flat_args = [x]
    in_specs = [pl.BlockSpec((tb, in_dim), lambda i: (i, 0))]
    for w, b in params:
        flat_args += [w, b]
        in_specs += [pl.BlockSpec(w.shape, lambda i: (0, 0)),   # weights stay resident
                     pl.BlockSpec(b.shape, lambda i: (0, 0))]

    hid = params[0][0].shape[1]
    flops = 2 * b_pad * (in_dim * hid + 3 * hid * hid + hid * out_dim)
    bytes_accessed = (
        x.size * x.dtype.itemsize
        + sum(w.size * w.dtype.itemsize + b.size * b.dtype.itemsize for w, b in params)
        + b_pad * out_dim * 4)

    out_full = pl.pallas_call(
        mlp_kernel,
        out_shape=jax.ShapeDtypeStruct((b_pad, out_dim), jnp.float32),
        grid_spec=pltpu.PrefetchScalarGridSpec(
            num_scalar_prefetch=0,
            grid=(n_tiles,),
            in_specs=in_specs,
            out_specs=pl.BlockSpec((tb, out_dim), lambda i: (i, 0)),
        ),
        compiler_params=pltpu.CompilerParams(
            dimension_semantics=_dimension_semantics(n_tiles)),
        cost_estimate=pl.CostEstimate(
            flops=flops, transcendentals=0, bytes_accessed=bytes_accessed),
    )(*flat_args)

    return out_full[:B, :]


def init_params(key, input_size, hidden_dim, out_dim=2):
    """PyTorch-Linear-style init; weights stored as (in, out) = W.T, all f32."""
    dims = [(input_size, hidden_dim),
            (hidden_dim, hidden_dim),
            (hidden_dim, hidden_dim),
            (hidden_dim, hidden_dim),
            (hidden_dim, out_dim)]
    params = []
    for i, (din, dout) in enumerate(dims):
        kw, kb = jax.random.split(jax.random.fold_in(key, i))
        bound = 1.0 / jnp.sqrt(jnp.float32(din))
        w = jax.random.uniform(kw, (din, dout), jnp.float32, -bound, bound)
        b = jax.random.uniform(kb, (1, dout), jnp.float32, -bound, bound)
        params.append((w, b))
    return params


def reference_forward(x, params):
    """Pure-JAX f32 reference mirroring the PyTorch forward."""
    h = x.astype(jnp.float32)
    for i, (w, b) in enumerate(params):
        h = h @ w + b
        if i < len(params) - 1:
            h = jnp.maximum(h, 0.0)
    return h


if __name__ == "__main__":
    key = jax.random.PRNGKey(0)
    input_size, hidden_dim, batch = 16, 32, 8

    kx, kp = jax.random.split(key)
    x = jax.random.normal(kx, (batch, input_size), jnp.float32)
    params = init_params(kp, input_size, hidden_dim)

    out = temp_humid_forward(x, params)
    out = jax.block_until_ready(out)

    ref = reference_forward(x, params)
    assert out.shape == (batch, 2), out.shape
    assert jnp.allclose(out, ref, atol=2e-2, rtol=2e-2), float(jnp.max(jnp.abs(out - ref)))

    print("KERNEL_OK")
</pallas_src>

<mosaic_0001>
module attributes {stable_mosaic.version = 11 : i64} {
  func.func @mlp_kernel(%arg0: i32, %arg1: memref<8x16xf32, #tpu.memory_space<vmem>>, %arg2: memref<16x32xf32, #tpu.memory_space<vmem>>, %arg3: memref<1x32xf32, #tpu.memory_space<vmem>>, %arg4: memref<32x32xf32, #tpu.memory_space<vmem>>, %arg5: memref<1x32xf32, #tpu.memory_space<vmem>>, %arg6: memref<32x32xf32, #tpu.memory_space<vmem>>, %arg7: memref<1x32xf32, #tpu.memory_space<vmem>>, %arg8: memref<32x32xf32, #tpu.memory_space<vmem>>, %arg9: memref<1x32xf32, #tpu.memory_space<vmem>>, %arg10: memref<32x2xf32, #tpu.memory_space<vmem>>, %arg11: memref<1x2xf32, #tpu.memory_space<vmem>>, %arg12: memref<8x2xf32, #tpu.memory_space<vmem>>) attributes {dimension_semantics = [#tpu.dimension_semantics<arbitrary>], iteration_bounds = array<i64: 1>, scalar_prefetch = 0 : i64, scratch_operands = 0 : i64, tpu.core_type = #tpu.core_type<tc>, window_params = [{transform_indices = @transform_0, window_bounds = array<i64: 8, 16>}, {pipeline_mode = #tpu.pipeline_mode<synchronous>, transform_indices = @transform_1, window_bounds = array<i64: 16, 32>}, {pipeline_mode = #tpu.pipeline_mode<synchronous>, transform_indices = @transform_2, window_bounds = array<i64: 1, 32>}, {pipeline_mode = #tpu.pipeline_mode<synchronous>, transform_indices = @transform_3, window_bounds = array<i64: 32, 32>}, {pipeline_mode = #tpu.pipeline_mode<synchronous>, transform_indices = @transform_4, window_bounds = array<i64: 1, 32>}, {pipeline_mode = #tpu.pipeline_mode<synchronous>, transform_indices = @transform_5, window_bounds = array<i64: 32, 32>}, {pipeline_mode = #tpu.pipeline_mode<synchronous>, transform_indices = @transform_6, window_bounds = array<i64: 1, 32>}, {pipeline_mode = #tpu.pipeline_mode<synchronous>, transform_indices = @transform_7, window_bounds = array<i64: 32, 32>}, {pipeline_mode = #tpu.pipeline_mode<synchronous>, transform_indices = @transform_8, window_bounds = array<i64: 1, 32>}, {pipeline_mode = #tpu.pipeline_mode<synchronous>, transform_indices = @transform_9, window_bounds = array<i64: 32, 2>}, {pipeline_mode = #tpu.pipeline_mode<synchronous>, transform_indices = @transform_10, window_bounds = array<i64: 1, 2>}, {transform_indices = @transform_11, window_bounds = array<i64: 8, 2>}]} {
    %c0 = arith.constant 0 : index
    %c0_0 = arith.constant 0 : index
    %0 = vector.load %arg1[%c0, %c0_0] : memref<8x16xf32, #tpu.memory_space<vmem>>, vector<8x16xf32>
    %c0_1 = arith.constant 0 : index
    %c0_2 = arith.constant 0 : index
    %1 = vector.load %arg2[%c0_1, %c0_2] : memref<16x32xf32, #tpu.memory_space<vmem>>, vector<16x32xf32>
    %cst = arith.constant dense<0.000000e+00> : vector<8x32xf32>
    %2 = tpu.matmul %0, %1, %cst {dimension_numbers = #tpu.dot_dimension_numbers<[1], [0], [0], [1], [0, 0, 1, 1], [], []>} : vector<8x16xf32>, vector<16x32xf32>, vector<8x32xf32> -> vector<8x32xf32>
    %c0_3 = arith.constant 0 : index
    %c0_4 = arith.constant 0 : index
    %3 = vector.load %arg3[%c0_3, %c0_4] : memref<1x32xf32, #tpu.memory_space<vmem>>, vector<1x32xf32>
    %4 = vector.broadcast %3 : vector<1x32xf32> to vector<8x32xf32>
    %5 = arith.addf %2, %4 : vector<8x32xf32>
    %cst_5 = arith.constant 0.000000e+00 : f32
    %6 = vector.broadcast %cst_5 : f32 to vector<8x32xf32>
    %7 = arith.maximumf %5, %6 : vector<8x32xf32>
    %c0_6 = arith.constant 0 : index
    %c0_7 = arith.constant 0 : index
    %8 = vector.load %arg4[%c0_6, %c0_7] : memref<32x32xf32, #tpu.memory_space<vmem>>, vector<32x32xf32>
    %cst_8 = arith.constant dense<0.000000e+00> : vector<8x32xf32>
    %9 = tpu.matmul %7, %8, %cst_8 {dimension_numbers = #tpu.dot_dimension_numbers<[1], [0], [0], [1], [0, 0, 1, 1], [], []>} : vector<8x32xf32>, vector<32x32xf32>, vector<8x32xf32> -> vector<8x32xf32>
    %c0_9 = arith.constant 0 : index
    %c0_10 = arith.constant 0 : index
    %10 = vector.load %arg5[%c0_9, %c0_10] : memref<1x32xf32, #tpu.memory_space<vmem>>, vector<1x32xf32>
    %11 = vector.broadcast %10 : vector<1x32xf32> to vector<8x32xf32>
    %12 = arith.addf %9, %11 : vector<8x32xf32>
    %cst_11 = arith.constant 0.000000e+00 : f32
    %13 = vector.broadcast %cst_11 : f32 to vector<8x32xf32>
    %14 = arith.maximumf %12, %13 : vector<8x32xf32>
    %c0_12 = arith.constant 0 : index
    %c0_13 = arith.constant 0 : index
    %15 = vector.load %arg6[%c0_12, %c0_13] : memref<32x32xf32, #tpu.memory_space<vmem>>, vector<32x32xf32>
    %cst_14 = arith.constant dense<0.000000e+00> : vector<8x32xf32>
    %16 = tpu.matmul %14, %15, %cst_14 {dimension_numbers = #tpu.dot_dimension_numbers<[1], [0], [0], [1], [0, 0, 1, 1], [], []>} : vector<8x32xf32>, vector<32x32xf32>, vector<8x32xf32> -> vector<8x32xf32>
    %c0_15 = arith.constant 0 : index
    %c0_16 = arith.constant 0 : index
    %17 = vector.load %arg7[%c0_15, %c0_16] : memref<1x32xf32, #tpu.memory_space<vmem>>, vector<1x32xf32>
    %18 = vector.broadcast %17 : vector<1x32xf32> to vector<8x32xf32>
    %19 = arith.addf %16, %18 : vector<8x32xf32>
    %cst_17 = arith.constant 0.000000e+00 : f32
    %20 = vector.broadcast %cst_17 : f32 to vector<8x32xf32>
    %21 = arith.maximumf %19, %20 : vector<8x32xf32>
    %c0_18 = arith.constant 0 : index
    %c0_19 = arith.constant 0 : index
    %22 = vector.load %arg8[%c0_18, %c0_19] : memref<32x32xf32, #tpu.memory_space<vmem>>, vector<32x32xf32>
    %cst_20 = arith.constant dense<0.000000e+00> : vector<8x32xf32>
    %23 = tpu.matmul %21, %22, %cst_20 {dimension_numbers = #tpu.dot_dimension_numbers<[1], [0], [0], [1], [0, 0, 1, 1], [], []>} : vector<8x32xf32>, vector<32x32xf32>, vector<8x32xf32> -> vector<8x32xf32>
    %c0_21 = arith.constant 0 : index
    %c0_22 = arith.constant 0 : index
    %24 = vector.load %arg9[%c0_21, %c0_22] : memref<1x32xf32, #tpu.memory_space<vmem>>, vector<1x32xf32>
    %25 = vector.broadcast %24 : vector<1x32xf32> to vector<8x32xf32>
    %26 = arith.addf %23, %25 : vector<8x32xf32>
    %cst_23 = arith.constant 0.000000e+00 : f32
    %27 = vector.broadcast %cst_23 : f32 to vector<8x32xf32>
    %28 = arith.maximumf %26, %27 : vector<8x32xf32>
    %c0_24 = arith.constant 0 : index
    %c0_25 = arith.constant 0 : index
    %29 = vector.load %arg10[%c0_24, %c0_25] : memref<32x2xf32, #tpu.memory_space<vmem>>, vector<32x2xf32>
    %cst_26 = arith.constant dense<0.000000e+00> : vector<8x2xf32>
    %30 = tpu.matmul %28, %29, %cst_26 {dimension_numbers = #tpu.dot_dimension_numbers<[1], [0], [0], [1], [0, 0, 1, 1], [], []>} : vector<8x32xf32>, vector<32x2xf32>, vector<8x2xf32> -> vector<8x2xf32>
    %c0_27 = arith.constant 0 : index
    %c0_28 = arith.constant 0 : index
    %31 = vector.load %arg11[%c0_27, %c0_28] : memref<1x2xf32, #tpu.memory_space<vmem>>, vector<1x2xf32>
    %32 = vector.broadcast %31 : vector<1x2xf32> to vector<8x2xf32>
    %33 = arith.addf %30, %32 : vector<8x2xf32>
    %c0_29 = arith.constant 0 : index
    %c0_30 = arith.constant 0 : index
    %34 = vector.load %arg12[%c0_29, %c0_30] : memref<8x2xf32, #tpu.memory_space<vmem>>, vector<8x2xf32>
    tpu.vector_store %arg12[%c0_29, %c0_30], %33 {strides = array<i32>} : memref<8x2xf32, #tpu.memory_space<vmem>>, vector<8x2xf32>,
    return
  }
  func.func @transform_0(%arg0: i32) -> (i32, i32) {
    %c0_i32 = arith.constant 0 : i32
    %c0_i32_0 = arith.constant 0 : i32
    return %arg0, %c0_i32 : i32, i32
  }
  func.func @transform_1(%arg0: i32) -> (i32, i32) {
    %c0_i32 = arith.constant 0 : i32
    %c0_i32_0 = arith.constant 0 : i32
    %c0_i32_1 = arith.constant 0 : i32
    return %c0_i32, %c0_i32_0 : i32, i32
  }
  func.func @transform_2(%arg0: i32) -> (i32, i32) {
    %c0_i32 = arith.constant 0 : i32
    %c0_i32_0 = arith.constant 0 : i32
    %c0_i32_1 = arith.constant 0 : i32
    return %c0_i32, %c0_i32_0 : i32, i32
  }
  func.func @transform_3(%arg0: i32) -> (i32, i32) {
    %c0_i32 = arith.constant 0 : i32
    %c0_i32_0 = arith.constant 0 : i32
    %c0_i32_1 = arith.constant 0 : i32
    return %c0_i32, %c0_i32_0 : i32, i32
  }
  func.func @transform_4(%arg0: i32) -> (i32, i32) {
    %c0_i32 = arith.constant 0 : i32
    %c0_i32_0 = arith.constant 0 : i32
    %c0_i32_1 = arith.constant 0 : i32
    return %c0_i32, %c0_i32_0 : i32, i32
  }
  func.func @transform_5(%arg0: i32) -> (i32, i32) {
    %c0_i32 = arith.constant 0 : i32
    %c0_i32_0 = arith.constant 0 : i32
    %c0_i32_1 = arith.constant 0 : i32
    return %c0_i32, %c0_i32_0 : i32, i32
  }
  func.func @transform_6(%arg0: i32) -> (i32, i32) {
    %c0_i32 = arith.constant 0 : i32
    %c0_i32_0 = arith.constant 0 : i32
    %c0_i32_1 = arith.constant 0 : i32
    return %c0_i32, %c0_i32_0 : i32, i32
  }
  func.func @transform_7(%arg0: i32) -> (i32, i32) {
    %c0_i32 = arith.constant 0 : i32
    %c0_i32_0 = arith.constant 0 : i32
    %c0_i32_1 = arith.constant 0 : i32
    return %c0_i32, %c0_i32_0 : i32, i32
  }
  func.func @transform_8(%arg0: i32) -> (i32, i32) {
    %c0_i32 = arith.constant 0 : i32
    %c0_i32_0 = arith.constant 0 : i32
    %c0_i32_1 = arith.constant 0 : i32
    return %c0_i32, %c0_i32_0 : i32, i32
  }
  func.func @transform_9(%arg0: i32) -> (i32, i32) {
    %c0_i32 = arith.constant 0 : i32
    %c0_i32_0 = arith.constant 0 : i32
    %c0_i32_1 = arith.constant 0 : i32
    return %c0_i32, %c0_i32_0 : i32, i32
  }
  func.func @transform_10(%arg0: i32) -> (i32, i32) {
    %c0_i32 = arith.constant 0 : i32
    %c0_i32_0 = arith.constant 0 : i32
    %c0_i32_1 = arith.constant 0 : i32
    return %c0_i32, %c0_i32_0 : i32, i32
  }
  func.func @transform_11(%arg0: i32) -> (i32, i32) {
    %c0_i32 = arith.constant 0 : i32
    %c0_i32_0 = arith.constant 0 : i32
    return %arg0, %c0_i32 : i32, i32
  }
}

</mosaic_0001>

<llo_original>
// kernel: tpu_custom_call.1
$region0: #{tpu_custom_call.1}
  #allocation0 [shape = 'u32[]', space=smem, size = 0x4, offset = 0x4, fixed_abs, tag = 'smem constant byte address 0x4 - core index']
  #allocation1 [shape = 'u32[144,128]{1,0:T(1,128)}', space=vmem, size = 0x12000, scoped, tag = 'internal scratch']
  %s0 = inlined_call_operand.hbm [shape: f32[8,16], index: 0, kind: input, shape index: {}]
  %s1 = inlined_call_operand.hbm [shape: f32[16,32], index: 1, kind: input, shape index: {}]
  %s2 = inlined_call_operand.vmem [shape: f32[1,32], index: 2, kind: input, shape index: {}]
  %s3 = inlined_call_operand.vmem [shape: f32[32,32], index: 3, kind: input, shape index: {}]
  %s4 = inlined_call_operand.vmem [shape: f32[1,32], index: 4, kind: input, shape index: {}]
  %s5 = inlined_call_operand.hbm [shape: f32[32,32], index: 5, kind: input, shape index: {}]
  %s6 = inlined_call_operand.vmem [shape: f32[1,32], index: 6, kind: input, shape index: {}]
  %s7 = inlined_call_operand.hbm [shape: f32[32,32], index: 7, kind: input, shape index: {}]
  %s8 = inlined_call_operand.vmem [shape: f32[1,32], index: 8, kind: input, shape index: {}]
  %s9 = inlined_call_operand.vmem [shape: f32[32,2], index: 9, kind: input, shape index: {}]
  %s10 = inlined_call_operand.vmem [shape: f32[1,2], index: 10, kind: input, shape index: {}]
  %s11 = inlined_call_operand.vmem [shape: f32[8,2], index: 11, kind: output, shape index: {}]
  %s12 = sld [smem:[#allocation0]]
  $region70: #{tpu_custom_call.1} parent=0
    _
  %s14 = ssub.s32 1, %s12
  %s15 = scalar_select 0, %s14, %s12
  $region1: #{tpu_custom_call.1} parent=0
    #allocation2 [shape = 'u8[4096]{0}', space=vmem, size = 0x1000, scoped, tag = 'input window, operand 0, single buffered']
    #allocation3 [shape = 's32[1]{0}', space=sflag, size = 0x4, scoped, tag = 'scoped memory for tpu_custom_call.1']
    #allocation4 [shape = 'u8[8192]{0}', space=vmem, size = 0x2000, scoped, tag = 'input window, operand 1, single buffered']
    #allocation5 [shape = 's32[1]{0}', space=sflag, size = 0x4, scoped, tag = 'scoped memory for tpu_custom_call.1']
    #allocation6 [shape = 'u8[16384]{0}', space=vmem, size = 0x4000, scoped, tag = 'input window, operand 5, single buffered']
    #allocation7 [shape = 'u8[16384]{0}', space=vmem, size = 0x4000, scoped, tag = 'input window, operand 7, single buffered']
    #allocation8 [shape = 's32[1]{0}', space=sflag, size = 0x4, scoped, tag = 'scoped memory for tpu_custom_call.1']
    %16 = vsyncpa [#allocation3], 0
    %17 = vsyncpa [#allocation5], 0
    %18 = vsyncpa [#allocation8], 0
    // Predicated region
    $region2: #{tpu_custom_call.1} parent=1 // pred_check
      _
    $region3: #{tpu_custom_call.1} parent=1 // pred_check_branch
      %20 = sbr.rel (0) target = $region5
    $region4: #{tpu_custom_call.1} parent=1 // pred_region
      %s22 = ssub.s32 128, 128
      %23 = vsyncadd [#allocation3], %s22
      %s25 = sshll.u32 [#allocation2], 4
      %s26 = int_to_ptr.vmem [resolvable:$true] %s25
      %28 = dma.hbm_to_vmem [thread:$0]  %s0, 128, %s26, [#allocation3]
    $region5: #{tpu_custom_call.1} parent=1 // pred_fallthru
      _
    // Predicated region
    $region6: #{tpu_custom_call.1} parent=1 // pred_check
      _
    $region7: #{tpu_custom_call.1} parent=1 // pred_check_branch
      %30 = sbr.rel (0) target = $region9
    $region8: #{tpu_custom_call.1} parent=1 // pred_region
      %s32 = ssub.s32 256, 256
      %33 = vsyncadd [#allocation5], %s32
      %s34 = sshll.u32 [#allocation4], 4
      %s35 = int_to_ptr.vmem [resolvable:$true] %s34
      %40 = dma.hbm_to_vmem [thread:$0]  %s1, 256, %s35, [#allocation5], 128, 128, 8
    $region9: #{tpu_custom_call.1} parent=1 // pred_fallthru
      _
    // Predicated region
    $region10: #{tpu_custom_call.1} parent=1 // pred_check
      _
    $region11: #{tpu_custom_call.1} parent=1 // pred_check_branch
      %42 = sbr.rel (0) target = $region13
    $region12: #{tpu_custom_call.1} parent=1 // pred_region
      _
    $region13: #{tpu_custom_call.1} parent=1 // pred_fallthru
      _
    // Predicated region
    $region14: #{tpu_custom_call.1} parent=1 // pred_check
      _
    $region15: #{tpu_custom_call.1} parent=1 // pred_check_branch
      %44 = sbr.rel (0) target = $region17
    $region16: #{tpu_custom_call.1} parent=1 // pred_region
      _
    $region17: #{tpu_custom_call.1} parent=1 // pred_fallthru
      _
    // Predicated region
    $region18: #{tpu_custom_call.1} parent=1 // pred_check
      _
    $region19: #{tpu_custom_call.1} parent=1 // pred_check_branch
      %46 = sbr.rel (0) target = $region21
    $region20: #{tpu_custom_call.1} parent=1 // pred_region
      _
    $region21: #{tpu_custom_call.1} parent=1 // pred_fallthru
      _
    // Predicated region
    $region22: #{tpu_custom_call.1} parent=1 // pred_check
      _
    $region23: #{tpu_custom_call.1} parent=1 // pred_check_branch
      %48 = sbr.rel (0) target = $region25
    $region24: #{tpu_custom_call.1} parent=1 // pred_region
      %s50 = ssub.s32 512, 512
      %51 = vsyncadd [#allocation5], %s50
      %s52 = sshll.u32 [#allocation6], 4
      %s53 = int_to_ptr.vmem [resolvable:$true] %s52
      %58 = dma.hbm_to_vmem [thread:$0]  %s5, 512, %s53, [#allocation5], 128, 128, 8
    $region25: #{tpu_custom_call.1} parent=1 // pred_fallthru
      _
    // Predicated region
    $region26: #{tpu_custom_call.1} parent=1 // pred_check
      _
    $region27: #{tpu_custom_call.1} parent=1 // pred_check_branch
      %60 = sbr.rel (0) target = $region29
    $region28: #{tpu_custom_call.1} parent=1 // pred_region
      _
    $region29: #{tpu_custom_call.1} parent=1 // pred_fallthru
      _
    // Predicated region
    $region30: #{tpu_custom_call.1} parent=1 // pred_check
      _
    $region31: #{tpu_custom_call.1} parent=1 // pred_check_branch
      %62 = sbr.rel (0) target = $region33
    $region32: #{tpu_custom_call.1} parent=1 // pred_region
      %s64 = ssub.s32 512, 512
      %65 = vsyncadd [#allocation8], %s64
      %s66 = sshll.u32 [#allocation7], 4
      %s67 = int_to_ptr.vmem [resolvable:$true] %s66
      %72 = dma.hbm_to_vmem [thread:$0]  %s7, 512, %s67, [#allocation8], 128, 128, 8
    $region33: #{tpu_custom_call.1} parent=1 // pred_fallthru
      _
    // Predicated region
    $region34: #{tpu_custom_call.1} parent=1 // pred_check
      _
    $region35: #{tpu_custom_call.1} parent=1 // pred_check_branch
      %74 = sbr.rel (0) target = $region37
    $region36: #{tpu_custom_call.1} parent=1 // pred_region
      _
    $region37: #{tpu_custom_call.1} parent=1 // pred_fallthru
      _
    // Predicated region
    $region38: #{tpu_custom_call.1} parent=1 // pred_check
      _
    $region39: #{tpu_custom_call.1} parent=1 // pred_check_branch
      %76 = sbr.rel (0) target = $region41
    $region40: #{tpu_custom_call.1} parent=1 // pred_region
      _
    $region41: #{tpu_custom_call.1} parent=1 // pred_fallthru
      _
    // Predicated region
    $region42: #{tpu_custom_call.1} parent=1 // pred_check
      _
    $region43: #{tpu_custom_call.1} parent=1 // pred_check_branch
      %78 = sbr.rel (0) target = $region45
    $region44: #{tpu_custom_call.1} parent=1 // pred_region
      _
    $region45: #{tpu_custom_call.1} parent=1 // pred_fallthru
      _
    // Predicated region
    $region46: #{tpu_custom_call.1} parent=1 // pred_check
      _
    $region47: #{tpu_custom_call.1} parent=1 // pred_check_branch
      %80 = sbr.rel (0) target = $region49
    $region48: #{tpu_custom_call.1} parent=1 // pred_region
      %81 = dma.done [#allocation3], 128
    $region49: #{tpu_custom_call.1} parent=1 // pred_fallthru
      _
    // Predicated region
    $region50: #{tpu_custom_call.1} parent=1 // pred_check
      _
    $region51: #{tpu_custom_call.1} parent=1 // pred_check_branch
      %83 = sbr.rel (0) target = $region53
    $region52: #{tpu_custom_call.1} parent=1 // pred_region
      %84 = dma.done [#allocation5], 256
    $region53: #{tpu_custom_call.1} parent=1 // pred_fallthru
      _
    // Predicated region
    $region54: #{tpu_custom_call.1} parent=1 // pred_check
      _
    $region55: #{tpu_custom_call.1} parent=1 // pred_check_branch
      %86 = sbr.rel (0) target = $region57
    $region56: #{tpu_custom_call.1} parent=1 // pred_region
      %87 = dma.done [#allocation5], 512
    $region57: #{tpu_custom_call.1} parent=1 // pred_fallthru
      _
    // Predicated region
    $region58: #{tpu_custom_call.1} parent=1 // pred_check
      _
    $region59: #{tpu_custom_call.1} parent=1 // pred_check_branch
      %89 = sbr.rel (0) target = $region61
    $region60: #{tpu_custom_call.1} parent=1 // pred_region
      %90 = dma.done [#allocation8], 512
    $region61: #{tpu_custom_call.1} parent=1 // pred_fallthru
      _
    %v91 = vld [vmem:[#allocation2] sm:$0xff]
    %v92 = vld [vmem:[#allocation4] sm:$0xff]
    %v93 = vld [vmem:[#allocation4 + $0x8] sm:$0xff]
    %v94 = vld [vmem:[%s2] sm:$0x1]
    %v96 = vlaneseq
    %v97 = vshrl.u32 %v96, 7
    %v98 = vsub.s32 0, %v97
    %v99 = vrot.slane %v94, %v98
    %vm101 = vcmask 130048
    %v103 = vsel %vm101, %v91, 0
    %105 = vmatprep.subr.mxu0 0.0
    %106 = vmatpush1.msra.mxu0 0.0
    %107 = vmatprep.subr.mxu0 0.0
    %108 = vmatpush1.msra.mxu0 0.0
    %109 = vmatprep.subr.mxu0 0.0
    %110 = vmatpush1.msra.mxu0 0.0
    %111 = vmatprep.subr.mxu0 0.0
    %112 = vmatpush1.msra.mxu0 0.0
    %113 = vmatprep.subr.mxu0 0.0
    %114 = vmatpush1.msra.mxu0 0.0
    %115 = vmatprep.subr.mxu0 0.0
    %116 = vmatpush1.msra.mxu0 0.0
    %117 = vmatprep.subr.mxu0 0.0
    %118 = vmatpush1.msra.mxu0 0.0
    %119 = vmatprep.subr.mxu0 0.0
    %120 = vmatpush1.msra.mxu0 0.0
    %121 = vmatprep.subr.mxu0 0.0
    %122 = vmatpush1.msra.mxu0 0.0
    %123 = vmatprep.subr.mxu0 0.0
    %124 = vmatpush1.msra.mxu0 0.0
    %125 = vmatprep.subr.mxu0 0.0
    %126 = vmatpush1.msra.mxu0 0.0
    %127 = vmatprep.subr.mxu0 0.0
    %128 = vmatpush1.msra.mxu0 0.0
    %129 = vmatprep.subr.mxu0 0.0
    %130 = vmatpush1.msra.mxu0 0.0
    %131 = vmatprep.subr.mxu0 0.0
    %132 = vmatpush1.msra.mxu0 0.0
    %133 = vmatprep.subr.mxu0 0.0
    %134 = vmatpush1.msra.mxu0 %v93
    %135 = vmatprep.subr.mxu0 0.0
    %136 = vmatpush1.msra.mxu0 %v92
    %137 = vmatprep.subr.mxu0 0.0
    %138 = vmatpush2.msra.mxu0 0.0
    %139 = vmatprep.subr.mxu0 0.0
    %140 = vmatpush2.msra.mxu0 0.0
    %141 = vmatprep.subr.mxu0 0.0
    %142 = vmatpush2.msra.mxu0 0.0
    %143 = vmatprep.subr.mxu0 0.0
    %144 = vmatpush2.msra.mxu0 0.0
    %145 = vmatprep.subr.mxu0 0.0
    %146 = vmatpush2.msra.mxu0 0.0
    %147 = vmatprep.subr.mxu0 0.0
    %148 = vmatpush2.msra.mxu0 0.0
    %149 = vmatprep.subr.mxu0 0.0
    %150 = vmatpush2.msra.mxu0 0.0
    %151 = vmatprep.subr.mxu0 0.0
    %152 = vmatpush2.msra.mxu0 0.0
    %153 = vmatprep.subr.mxu0 0.0
    %154 = vmatpush2.msra.mxu0 0.0
    %155 = vmatprep.subr.mxu0 0.0
    %156 = vmatpush2.msra.mxu0 0.0
    %157 = vmatprep.subr.mxu0 0.0
    %158 = vmatpush2.msra.mxu0 0.0
    %159 = vmatprep.subr.mxu0 0.0
    %160 = vmatpush2.msra.mxu0 0.0
    %161 = vmatprep.subr.mxu0 0.0
    %162 = vmatpush2.msra.mxu0 0.0
    %163 = vmatprep.subr.mxu0 0.0
    %164 = vmatpush2.msra.mxu0 0.0
    %165 = vmatprep.subr.mxu0 0.0
    %166 = vmatpush2.msra.mxu0 0.0
    %167 = vmatprep.subr.mxu0 0.0
    %168 = vmatpush2.msra.mxu0 0.0
    %169 = vmatprep.mubr.f32.mxu0 0.0
    %170 = vmatmul.mubr.f32.gmra.mxu0 %v103
    %v171 = vpop.f32.mrf.mxu0
    %v172 = vadd.f32 %v99, %v171
    %v173 = vpop.f32.mrf.mxu0
    %174 = vdwg.mxu0
    %v175 = vmax.f32 %v172, 0.0
    %v176 = vld [vmem:[%s3] sm:$0xff]
    %v177 = vld [vmem:[%s3 + $0x8] sm:$0xff]
    %v178 = vld [vmem:[%s3 + $0x10] sm:$0xff]
    %v179 = vld [vmem:[%s3 + $0x18] sm:$0xff]
    %v180 = vld [vmem:[%s4] sm:$0x1]
    %v182 = vlaneseq
    %v183 = vshrl.u32 %v182, 7
    %v184 = vsub.s32 0, %v183
    %v185 = vrot.slane %v180, %v184
    %vm187 = vcmask 261120
    %v189 = vsel %vm187, %v175, 0
    %191 = vmatprep.subr.mxu0 0.0
    %192 = vmatpush1.msra.mxu0 0.0
    %193 = vmatprep.subr.mxu0 0.0
    %194 = vmatpush1.msra.mxu0 0.0
    %195 = vmatprep.subr.mxu0 0.0
    %196 = vmatpush1.msra.mxu0 0.0
    %197 = vmatprep.subr.mxu0 0.0
    %198 = vmatpush1.msra.mxu0 0.0
    %199 = vmatprep.subr.mxu0 0.0
    %200 = vmatpush1.msra.mxu0 0.0
    %201 = vmatprep.subr.mxu0 0.0
    %202 = vmatpush1.msra.mxu0 0.0
    %203 = vmatprep.subr.mxu0 0.0
    %204 = vmatpush1.msra.mxu0 0.0
    %205 = vmatprep.subr.mxu0 0.0
    %206 = vmatpush1.msra.mxu0 0.0
    %207 = vmatprep.subr.mxu0 0.0
    %208 = vmatpush1.msra.mxu0 0.0
    %209 = vmatprep.subr.mxu0 0.0
    %210 = vmatpush1.msra.mxu0 0.0
    %211 = vmatprep.subr.mxu0 0.0
    %212 = vmatpush1.msra.mxu0 0.0
    %213 = vmatprep.subr.mxu0 0.0
    %214 = vmatpush1.msra.mxu0 0.0
    %215 = vmatprep.subr.mxu0 0.0
    %216 = vmatpush1.msra.mxu0 %v179
    %217 = vmatprep.subr.mxu0 0.0
    %218 = vmatpush1.msra.mxu0 %v178
    %219 = vmatprep.subr.mxu0 0.0
    %220 = vmatpush1.msra.mxu0 %v177
    %221 = vmatprep.subr.mxu0 0.0
    %222 = vmatpush1.msra.mxu0 %v176
    %223 = vmatprep.subr.mxu0 0.0
    %224 = vmatpush2.msra.mxu0 0.0
    %225 = vmatprep.subr.mxu0 0.0
    %226 = vmatpush2.msra.mxu0 0.0
    %227 = vmatprep.subr.mxu0 0.0
    %228 = vmatpush2.msra.mxu0 0.0
    %229 = vmatprep.subr.mxu0 0.0
    %230 = vmatpush2.msra.mxu0 0.0
    %231 = vmatprep.subr.mxu0 0.0
    %232 = vmatpush2.msra.mxu0 0.0
    %233 = vmatprep.subr.mxu0 0.0
    %234 = vmatpush2.msra.mxu0 0.0
    %235 = vmatprep.subr.mxu0 0.0
    %236 = vmatpush2.msra.mxu0 0.0
    %237 = vmatprep.subr.mxu0 0.0
    %238 = vmatpush2.msra.mxu0 0.0
    %239 = vmatprep.subr.mxu0 0.0
    %240 = vmatpush2.msra.mxu0 0.0
    %241 = vmatprep.subr.mxu0 0.0
    %242 = vmatpush2.msra.mxu0 0.0
    %243 = vmatprep.subr.mxu0 0.0
    %244 = vmatpush2.msra.mxu0 0.0
    %245 = vmatprep.subr.mxu0 0.0
    %246 = vmatpush2.msra.mxu0 0.0
    %247 = vmatprep.subr.mxu0 0.0
    %248 = vmatpush2.msra.mxu0 0.0
    %249 = vmatprep.subr.mxu0 0.0
    %250 = vmatpush2.msra.mxu0 0.0
    %251 = vmatprep.subr.mxu0 0.0
    %252 = vmatpush2.msra.mxu0 0.0
    %253 = vmatprep.subr.mxu0 0.0
    %254 = vmatpush2.msra.mxu0 0.0
    %255 = vmatprep.mubr.f32.mxu0 0.0
    %256 = vmatmul.mubr.f32.gmra.mxu0 %v189
    %v257 = vpop.f32.mrf.mxu0
    %v258 = vadd.f32 %v185, %v257
    %v259 = vpop.f32.mrf.mxu0
    %260 = vdwg.mxu0
    %v261 = vmax.f32 %v258, 0.0
    %v262 = vld [vmem:[#allocation6] sm:$0xff]
    %v263 = vld [vmem:[#allocation6 + $0x8] sm:$0xff]
    %v264 = vld [vmem:[#allocation6 + $0x10] sm:$0xff]
    %v265 = vld [vmem:[#allocation6 + $0x18] sm:$0xff]
    %v266 = vld [vmem:[%s6] sm:$0x1]
    %v268 = vlaneseq
    %v269 = vshrl.u32 %v268, 7
    %v270 = vsub.s32 0, %v269
    %v271 = vrot.slane %v266, %v270
    %v274 = vsel %vm187, %v261, 0
    %276 = vmatprep.subr.mxu0 0.0
    %277 = vmatpush1.msra.mxu0 0.0
    %278 = vmatprep.subr.mxu0 0.0
    %279 = vmatpush1.msra.mxu0 0.0
    %280 = vmatprep.subr.mxu0 0.0
    %281 = vmatpush1.msra.mxu0 0.0
    %282 = vmatprep.subr.mxu0 0.0
    %283 = vmatpush1.msra.mxu0 0.0
    %284 = vmatprep.subr.mxu0 0.0
    %285 = vmatpush1.msra.mxu0 0.0
    %286 = vmatprep.subr.mxu0 0.0
    %287 = vmatpush1.msra.mxu0 0.0
    %288 = vmatprep.subr.mxu0 0.0
    %289 = vmatpush1.msra.mxu0 0.0
    %290 = vmatprep.subr.mxu0 0.0
    %291 = vmatpush1.msra.mxu0 0.0
    %292 = vmatprep.subr.mxu0 0.0
    %293 = vmatpush1.msra.mxu0 0.0
    %294 = vmatprep.subr.mxu0 0.0
    %295 = vmatpush1.msra.mxu0 0.0
    %296 = vmatprep.subr.mxu0 0.0
    %297 = vmatpush1.msra.mxu0 0.0
    %298 = vmatprep.subr.mxu0 0.0
    %299 = vmatpush1.msra.mxu0 0.0
    %300 = vmatprep.subr.mxu0 0.0
    %301 = vmatpush1.msra.mxu0 %v265
    %302 = vmatprep.subr.mxu0 0.0
    %303 = vmatpush1.msra.mxu0 %v264
    %304 = vmatprep.subr.mxu0 0.0
    %305 = vmatpush1.msra.mxu0 %v263
    %306 = vmatprep.subr.mxu0 0.0
    %307 = vmatpush1.msra.mxu0 %v262
    %308 = vmatprep.subr.mxu0 0.0
    %309 = vmatpush2.msra.mxu0 0.0
    %310 = vmatprep.subr.mxu0 0.0
    %311 = vmatpush2.msra.mxu0 0.0
    %312 = vmatprep.subr.mxu0 0.0
    %313 = vmatpush2.msra.mxu0 0.0
    %314 = vmatprep.subr.mxu0 0.0
    %315 = vmatpush2.msra.mxu0 0.0
    %316 = vmatprep.subr.mxu0 0.0
    %317 = vmatpush2.msra.mxu0 0.0
    %318 = vmatprep.subr.mxu0 0.0
    %319 = vmatpush2.msra.mxu0 0.0
    %320 = vmatprep.subr.mxu0 0.0
    %321 = vmatpush2.msra.mxu0 0.0
    %322 = vmatprep.subr.mxu0 0.0
    %323 = vmatpush2.msra.mxu0 0.0
    %324 = vmatprep.subr.mxu0 0.0
    %325 = vmatpush2.msra.mxu0 0.0
    %326 = vmatprep.subr.mxu0 0.0
    %327 = vmatpush2.msra.mxu0 0.0
    %328 = vmatprep.subr.mxu0 0.0
    %329 = vmatpush2.msra.mxu0 0.0
    %330 = vmatprep.subr.mxu0 0.0
    %331 = vmatpush2.msra.mxu0 0.0
    %332 = vmatprep.subr.mxu0 0.0
    %333 = vmatpush2.msra.mxu0 0.0
    %334 = vmatprep.subr.mxu0 0.0
    %335 = vmatpush2.msra.mxu0 0.0
    %336 = vmatprep.subr.mxu0 0.0
    %337 = vmatpush2.msra.mxu0 0.0
    %338 = vmatprep.subr.mxu0 0.0
    %339 = vmatpush2.msra.mxu0 0.0
    %340 = vmatprep.mubr.f32.mxu0 0.0
    %341 = vmatmul.mubr.f32.gmra.mxu0 %v274
    %v342 = vpop.f32.mrf.mxu0
    %v343 = vadd.f32 %v271, %v342
    %v344 = vpop.f32.mrf.mxu0
    %345 = vdwg.mxu0
    %v346 = vmax.f32 %v343, 0.0
    %v347 = vld [vmem:[#allocation7] sm:$0xff]
    %v348 = vld [vmem:[#allocation7 + $0x8] sm:$0xff]
    %v349 = vld [vmem:[#allocation7 + $0x10] sm:$0xff]
    %v350 = vld [vmem:[#allocation7 + $0x18] sm:$0xff]
    %v351 = vld [vmem:[%s8] sm:$0x1]
    %v353 = vlaneseq
    %v354 = vshrl.u32 %v353, 7
    %v355 = vsub.s32 0, %v354
    %v356 = vrot.slane %v351, %v355
    %v359 = vsel %vm187, %v346, 0
    %361 = vmatprep.subr.mxu0 0.0
    %362 = vmatpush1.msra.mxu0 0.0
    %363 = vmatprep.subr.mxu0 0.0
    %364 = vmatpush1.msra.mxu0 0.0
    %365 = vmatprep.subr.mxu0 0.0
    %366 = vmatpush1.msra.mxu0 0.0
    %367 = vmatprep.subr.mxu0 0.0
    %368 = vmatpush1.msra.mxu0 0.0
    %369 = vmatprep.subr.mxu0 0.0
    %370 = vmatpush1.msra.mxu0 0.0
    %371 = vmatprep.subr.mxu0 0.0
    %372 = vmatpush1.msra.mxu0 0.0
    %373 = vmatprep.subr.mxu0 0.0
    %374 = vmatpush1.msra.mxu0 0.0
    %375 = vmatprep.subr.mxu0 0.0
    %376 = vmatpush1.msra.mxu0 0.0
    %377 = vmatprep.subr.mxu0 0.0
    %378 = vmatpush1.msra.mxu0 0.0
    %379 = vmatprep.subr.mxu0 0.0
    %380 = vmatpush1.msra.mxu0 0.0
    %381 = vmatprep.subr.mxu0 0.0
    %382 = vmatpush1.msra.mxu0 0.0
    %383 = vmatprep.subr.mxu0 0.0
    %384 = vmatpush1.msra.mxu0 0.0
    %385 = vmatprep.subr.mxu0 0.0
    %386 = vmatpush1.msra.mxu0 %v350
    %387 = vmatprep.subr.mxu0 0.0
    %388 = vmatpush1.msra.mxu0 %v349
    %389 = vmatprep.subr.mxu0 0.0
    %390 = vmatpush1.msra.mxu0 %v348
    %391 = vmatprep.subr.mxu0 0.0
    %392 = vmatpush1.msra.mxu0 %v347
    %393 = vmatprep.subr.mxu0 0.0
    %394 = vmatpush2.msra.mxu0 0.0
    %395 = vmatprep.subr.mxu0 0.0
    %396 = vmatpush2.msra.mxu0 0.0
    %397 = vmatprep.subr.mxu0 0.0
    %398 = vmatpush2.msra.mxu0 0.0
    %399 = vmatprep.subr.mxu0 0.0
    %400 = vmatpush2.msra.mxu0 0.0
    %401 = vmatprep.subr.mxu0 0.0
    %402 = vmatpush2.msra.mxu0 0.0
    %403 = vmatprep.subr.mxu0 0.0
    %404 = vmatpush2.msra.mxu0 0.0
    %405 = vmatprep.subr.mxu0 0.0
    %406 = vmatpush2.msra.mxu0 0.0
    %407 = vmatprep.subr.mxu0 0.0
    %408 = vmatpush2.msra.mxu0 0.0
    %409 = vmatprep.subr.mxu0 0.0
    %410 = vmatpush2.msra.mxu0 0.0
    %411 = vmatprep.subr.mxu0 0.0
    %412 = vmatpush2.msra.mxu0 0.0
    %413 = vmatprep.subr.mxu0 0.0
    %414 = vmatpush2.msra.mxu0 0.0
    %415 = vmatprep.subr.mxu0 0.0
    %416 = vmatpush2.msra.mxu0 0.0
    %417 = vmatprep.subr.mxu0 0.0
    %418 = vmatpush2.msra.mxu0 0.0
    %419 = vmatprep.subr.mxu0 0.0
    %420 = vmatpush2.msra.mxu0 0.0
    %421 = vmatprep.subr.mxu0 0.0
    %422 = vmatpush2.msra.mxu0 0.0
    %423 = vmatprep.subr.mxu0 0.0
    %424 = vmatpush2.msra.mxu0 0.0
    %425 = vmatprep.mubr.f32.mxu0 0.0
    %426 = vmatmul.mubr.f32.gmra.mxu0 %v359
    %v427 = vpop.f32.mrf.mxu0
    %v428 = vadd.f32 %v356, %v427
    %v429 = vpop.f32.mrf.mxu0
    %430 = vdwg.mxu0
    %v431 = vmax.f32 %v428, 0.0
    %v432 = vld [vmem:[%s9] sm:$0xff]
    %v433 = vld [vmem:[%s9 + $0x8] sm:$0xff]
    %v434 = vld [vmem:[%s9 + $0x10] sm:$0xff]
    %v435 = vld [vmem:[%s9 + $0x18] sm:$0xff]
    %v436 = vld [vmem:[%s10] sm:$0x1]
    %v438 = vlaneseq
    %v439 = vshrl.u32 %v438, 7
    %v440 = vsub.s32 0, %v439
    %v441 = vrot.slane %v436, %v440
    %v444 = vsel %vm187, %v431, 0
    %446 = vmatprep.subr.mxu0 0.0
    %447 = vmatpush1.msra.mxu0 0.0
    %448 = vmatprep.subr.mxu0 0.0
    %449 = vmatpush1.msra.mxu0 0.0
    %450 = vmatprep.subr.mxu0 0.0
    %451 = vmatpush1.msra.mxu0 0.0
    %452 = vmatprep.subr.mxu0 0.0
    %453 = vmatpush1.msra.mxu0 0.0
    %454 = vmatprep.subr.mxu0 0.0
    %455 = vmatpush1.msra.mxu0 0.0
    %456 = vmatprep.subr.mxu0 0.0
    %457 = vmatpush1.msra.mxu0 0.0
    %458 = vmatprep.subr.mxu0 0.0
    %459 = vmatpush1.msra.mxu0 0.0
    %460 = vmatprep.subr.mxu0 0.0
    %461 = vmatpush1.msra.mxu0 0.0
    %462 = vmatprep.subr.mxu0 0.0
    %463 = vmatpush1.msra.mxu0 0.0
    %464 = vmatprep.subr.mxu0 0.0
    %465 = vmatpush1.msra.mxu0 0.0
    %466 = vmatprep.subr.mxu0 0.0
    %467 = vmatpush1.msra.mxu0 0.0
    %468 = vmatprep.subr.mxu0 0.0
    %469 = vmatpush1.msra.mxu0 0.0
    %470 = vmatprep.subr.mxu0 0.0
    %471 = vmatpush1.msra.mxu0 %v435
    %472 = vmatprep.subr.mxu0 0.0
    %473 = vmatpush1.msra.mxu0 %v434
    %474 = vmatprep.subr.mxu0 0.0
    %475 = vmatpush1.msra.mxu0 %v433
    %476 = vmatprep.subr.mxu0 0.0
    %477 = vmatpush1.msra.mxu0 %v432
    %478 = vmatprep.subr.mxu0 0.0
    %479 = vmatpush2.msra.mxu0 0.0
    %480 = vmatprep.subr.mxu0 0.0
    %481 = vmatpush2.msra.mxu0 0.0
    %482 = vmatprep.subr.mxu0 0.0
    %483 = vmatpush2.msra.mxu0 0.0
    %484 = vmatprep.subr.mxu0 0.0
    %485 = vmatpush2.msra.mxu0 0.0
    %486 = vmatprep.subr.mxu0 0.0
    %487 = vmatpush2.msra.mxu0 0.0
    %488 = vmatprep.subr.mxu0 0.0
    %489 = vmatpush2.msra.mxu0 0.0
    %490 = vmatprep.subr.mxu0 0.0
    %491 = vmatpush2.msra.mxu0 0.0
    %492 = vmatprep.subr.mxu0 0.0
    %493 = vmatpush2.msra.mxu0 0.0
    %494 = vmatprep.subr.mxu0 0.0
    %495 = vmatpush2.msra.mxu0 0.0
    %496 = vmatprep.subr.mxu0 0.0
    %497 = vmatpush2.msra.mxu0 0.0
    %498 = vmatprep.subr.mxu0 0.0
    %499 = vmatpush2.msra.mxu0 0.0
    %500 = vmatprep.subr.mxu0 0.0
    %501 = vmatpush2.msra.mxu0 0.0
    %502 = vmatprep.subr.mxu0 0.0
    %503 = vmatpush2.msra.mxu0 0.0
    %504 = vmatprep.subr.mxu0 0.0
    %505 = vmatpush2.msra.mxu0 0.0
    %506 = vmatprep.subr.mxu0 0.0
    %507 = vmatpush2.msra.mxu0 0.0
    %508 = vmatprep.subr.mxu0 0.0
    %509 = vmatpush2.msra.mxu0 0.0
    %510 = vmatprep.mubr.f32.mxu0 0.0
    %511 = vmatmul.mubr.f32.gmra.mxu0 %v444
    %v512 = vpop.f32.mrf.mxu0
    %v513 = vadd.f32 %v441, %v512
    %v514 = vpop.f32.mrf.mxu0
    %515 = vdwg.mxu0
    %vm516 = vcmask 15360
    %517 = vst.msk [vmem:[%s11] sm:$0xff] %vm516, %v513
    // Predicated region
    $region62: #{tpu_custom_call.1} parent=1 // pred_check
      _
    $region63: #{tpu_custom_call.1} parent=1 // pred_check_branch
      %519 = sbr.rel (0) target = $region65
    $region64: #{tpu_custom_call.1} parent=1 // pred_region
      _
    $region65: #{tpu_custom_call.1} parent=1 // pred_fallthru
      _
    // Predicated region
    $region66: #{tpu_custom_call.1} parent=1 // pred_check
      _
    $region67: #{tpu_custom_call.1} parent=1 // pred_check_branch
      %521 = sbr.rel (0) target = $region69
    $region68: #{tpu_custom_call.1} parent=1 // pred_region
      _
    $region69: #{tpu_custom_call.1} parent=1 // pred_fallthru
      _
    %522 = vsyncpa [#allocation3], 1
    %523 = vsyncpa [#allocation5], 1
    %524 = vsyncpa [#allocation8], 1

</llo_original>
